<compile_context>
chip_gen: v7x
topology: tpu7x:2x2x1
jax: 0.10.0
libtpu: 0.0.40
codegen_flags: <defaults>
</compile_context>

<pallas_src>
import math

import jax
import jax.numpy as jnp
from jax.experimental import pallas as pl
from jax.experimental.pallas import tpu as pltpu


def get_feat(database, outputs):
    """Python glue identical to the PyTorch helper (tuple/list selection)."""
    if database == 'NYU-Depth-V2':
        res = outputs[0][-1]
    elif database == 'VGGSound-50k':
        res = outputs[1] if isinstance(outputs, tuple) else outputs
    else:
        res = outputs
    return res


# ----------------------------- Pallas kernel --------------------------------

_NATIVE_DTYPES = (jnp.float32, jnp.bfloat16)   # everything else -> f32 on host (rare)
_TARGET_STEP_BYTES = 8 * 1024 * 1024           # combined (t + s) bytes per grid step
_VMEM_LIMIT_BYTES = 48 * 1024 * 1024           # safe on v5e / v6e (128 MiB) & v7x (64 MiB/TC)
_SUB_CHUNK_ROWS = 512                          # bounds in-kernel f32 temporaries


def _round_down(x, m):
    return (x // m) * m


def _make_mse_kernel(tm, ch, nblocks, valid_rows, has_partial):
    """Kernel: accumulate sum((t-s)^2) of one (tm,128) tile into a (8,128) acc."""
    n_sub = tm // ch

    def tile_sum(t_ref, s_ref, blk, masked):
        def body(j, acc):
            r0 = pl.multiple_of(j * ch, ch)
            d = (t_ref[pl.ds(r0, ch), :].astype(jnp.float32)
                 - s_ref[pl.ds(r0, ch), :].astype(jnp.float32))
            if masked:
                # Select (not multiply!) so NaN/Inf garbage in the OOB part of a
                # partial block can never reach the accumulator.
                rows = (blk * tm + r0
                        + jax.lax.broadcasted_iota(jnp.int32, (ch, 1), 0))
                d = jnp.where(rows < valid_rows, d, 0.0)
            # Lane-resident partial: reduce (ch,128) -> (8,128) with VPU adds only.
            return acc + jnp.sum((d * d).reshape(ch // 8, 8, 128), axis=0)

        return jax.lax.fori_loop(0, n_sub, body,
                                 jnp.zeros((8, 128), jnp.float32), unroll=True)

    def kernel(t_ref, s_ref, out_ref, acc_ref):
        i = pl.program_id(0)

        @pl.when(i == 0)
        def _():
            acc_ref[...] = jnp.zeros_like(acc_ref)

        if has_partial:
            @pl.when(i < nblocks - 1)
            def _():
                acc_ref[...] += tile_sum(t_ref, s_ref, i, masked=False)

            @pl.when(i == nblocks - 1)
            def _():
                acc_ref[...] += tile_sum(t_ref, s_ref, i, masked=True)
        else:
            acc_ref[...] += tile_sum(t_ref, s_ref, i, masked=False)

        @pl.when(i == nblocks - 1)
        def _():
            out_ref[0, 0] = jnp.sum(acc_ref[...])

    return kernel


def _mse_pallas(t, s, *, tile_rows_cap=None):
    """mean((t - s)**2) over all elements via a bandwidth-bound Pallas kernel."""
    assert t.shape == s.shape, (t.shape, s.shape)
    n = math.prod(t.shape) if t.shape else 1

    def prep(x):
        if x.dtype not in _NATIVE_DTYPES:
            # TODO(synk): cast exotic dtypes (fp16/int) in-kernel instead of this host copy.
            x = x.astype(jnp.float32)
        return jnp.ravel(x)          # free bitcast for contiguous inputs

    tf, sf = prep(t), prep(s)

    tail = n % 128
    n_main = n - tail
    if tail:
        # TODO(synk): the prefix slice below may materialize a copy for ragged inputs;
        # a manual-DMA (memory_space=pl.ANY) path would stream the original buffer.
        dt = tf[n_main:].astype(jnp.float32) - sf[n_main:].astype(jnp.float32)
        tail_sum = jnp.sum(dt * dt)
        tf, sf = tf[:n_main], sf[:n_main]
    else:
        tail_sum = jnp.float32(0.0)

    if n_main == 0:                  # entire input is the (<128 element) tail
        return tail_sum / n

    M = n_main // 128
    t2d = tf.reshape(M, 128)
    s2d = sf.reshape(M, 128)

    itemsize_t = jnp.dtype(t2d.dtype).itemsize
    itemsize_s = jnp.dtype(s2d.dtype).itemsize
    align = 16 if (t2d.dtype == jnp.bfloat16 or s2d.dtype == jnp.bfloat16) else 8
    bytes_per_row = 128 * (itemsize_t + itemsize_s)

    # Tile rows: ~8 MiB combined input traffic per step, row-aligned for packing.
    tm = _TARGET_STEP_BYTES // bytes_per_row
    if tile_rows_cap is not None:    # test hook: force multi-block grids
        tm = min(tm, tile_rows_cap)
    tm = min(tm, M)
    tm = max(align, _round_down(tm, align))
    if tm > 1024:                    # chunk the in-tile reduction for big tiles
        tm = _round_down(tm, _SUB_CHUNK_ROWS)
        ch = _SUB_CHUNK_ROWS
    else:
        ch = tm

    nblocks = pl.cdiv(M, tm)
    has_partial = (M % tm) != 0      # last block reads past M rows -> mask it

    kernel = _make_mse_kernel(tm, ch, nblocks, M, has_partial)

    out = pl.pallas_call(
        kernel,
        out_shape=jax.ShapeDtypeStruct((1, 1), jnp.float32),
        grid_spec=pltpu.PrefetchScalarGridSpec(
            num_scalar_prefetch=0,
            grid=(nblocks,),
            in_specs=[
                pl.BlockSpec((tm, 128), lambda i: (i, 0)),
                pl.BlockSpec((tm, 128), lambda i: (i, 0)),
            ],
            out_specs=pl.BlockSpec((1, 1), lambda i: (0, 0),
                                   memory_space=pltpu.SMEM),
            scratch_shapes=[pltpu.VMEM((8, 128), jnp.float32)],
        ),
        compiler_params=pltpu.CompilerParams(
            # TODO(synk): on v7x add a leading CORE_PARALLEL axis of size 2 to
            # engage both TensorCores (plain "parallel" does not split cores).
            dimension_semantics=("arbitrary",),
            vmem_limit_bytes=_VMEM_LIMIT_BYTES,
        ),
        cost_estimate=pl.CostEstimate(
            flops=3 * n_main,
            transcendentals=0,
            bytes_accessed=n_main * (itemsize_t + itemsize_s) + 4,
        ),
    )(t2d, s2d)

    return (out[0, 0] + tail_sum) / n


class DistLoss:
    """JAX/Pallas port of the PyTorch DistLoss module."""

    def __init__(self, database):
        self.database_name = database

    def __call__(self, out_t, out_s):
        student_logits = get_feat(self.database_name, out_s)
        teacher_logits = get_feat(self.database_name, out_t)
        return _mse_pallas(teacher_logits, student_logits)


# ------------------------------- demo / check --------------------------------

if __name__ == "__main__":
    key = jax.random.PRNGKey(0)
    k1, k2, k3, k4, k5, k6 = jax.random.split(key, 6)

    # --- main check: teacher / student feature maps, NCHW, "else" branch ---
    B, C, H, W = 2, 4, 16, 16
    out_t = jax.random.normal(k1, (B, C, H, W), dtype=jnp.float32)
    out_s = jax.random.normal(k2, (B, C, H, W), dtype=jnp.float32)

    loss_fn = DistLoss(database="CIFAR-100")
    loss = jax.block_until_ready(loss_fn(out_t, out_s))
    ref = jnp.mean((out_t - out_s) ** 2)
    assert jnp.allclose(loss, ref, rtol=1e-5, atol=1e-6), (loss, ref)

    # --- partial last block (M % tm != 0) across multi-block grids ---
    t_odd = jax.random.normal(k3, (2, 5, 16, 16), dtype=jnp.float32)   # 2560 elems
    s_odd = jax.random.normal(k4, (2, 5, 16, 16), dtype=jnp.float32)
    ref_odd = jnp.mean((t_odd - s_odd) ** 2)
    for cap in (16, 8):   # force multi-block grids on this tiny input
        got = jax.block_until_ready(_mse_pallas(t_odd, s_odd, tile_rows_cap=cap))
        assert jnp.allclose(got, ref_odd, rtol=1e-5, atol=1e-6), (cap, got, ref_odd)

    # --- ragged tail (n % 128 != 0): in-wrapper tail sum + masked last block ---
    t_rag = jax.random.normal(k5, (2, 4, 17, 17), dtype=jnp.float32)   # 2312 elems
    s_rag = jax.random.normal(k6, (2, 4, 17, 17), dtype=jnp.float32)
    ref_rag = jnp.mean((t_rag - s_rag) ** 2)
    got_rag = jax.block_until_ready(_mse_pallas(t_rag, s_rag))
    assert jnp.allclose(got_rag, ref_rag, rtol=1e-5, atol=1e-6), (got_rag, ref_rag)

    # --- native bf16 inputs (no host-side cast / copy) ---
    t_bf = out_t.astype(jnp.bfloat16)
    s_bf = out_s.astype(jnp.bfloat16)
    ref_bf = jnp.mean((t_bf.astype(jnp.float32) - s_bf.astype(jnp.float32)) ** 2)
    got_bf = jax.block_until_ready(_mse_pallas(t_bf, s_bf))
    assert jnp.allclose(got_bf, ref_bf, rtol=1e-5, atol=1e-6), (got_bf, ref_bf)

    print("KERNEL_OK")
</pallas_src>

<mosaic_0001>
module attributes {stable_mosaic.version = 11 : i64} {
  func.func @kernel(%arg0: i32, %arg1: memref<16x128xf32, #tpu.memory_space<vmem>>, %arg2: memref<16x128xf32, #tpu.memory_space<vmem>>, %arg3: memref<1x1xf32, #tpu.memory_space<smem>>, %arg4: memref<8x128xf32, #tpu.memory_space<vmem>>) attributes {dimension_semantics = [#tpu.dimension_semantics<arbitrary>], iteration_bounds = array<i64: 1>, scalar_prefetch = 0 : i64, scratch_operands = 1 : i64, tpu.core_type = #tpu.core_type<tc>, window_params = [{transform_indices = @transform_0, window_bounds = array<i64: 16, 128>}, {transform_indices = @transform_1, window_bounds = array<i64: 16, 128>}, {transform_indices = @transform_2, window_bounds = array<i64: 1, 1>}]} {
    %c0_i32 = arith.constant 0 : i32
    %0 = arith.cmpi eq, %arg0, %c0_i32 : i32
    %1 = arith.extui %0 : i1 to i32
    %c0_i32_0 = arith.constant 0 : i32
    %2 = arith.cmpi ne, %1, %c0_i32_0 : i32
    scf.if %2 {
      %cst_10 = arith.constant 0.000000e+00 : f32
      %21 = vector.broadcast %cst_10 : f32 to vector<8x128xf32>
      %c0_11 = arith.constant 0 : index
      %c0_12 = arith.constant 0 : index
      %22 = vector.load %arg4[%c0_11, %c0_12] : memref<8x128xf32, #tpu.memory_space<vmem>>, vector<8x128xf32>
      tpu.vector_store %arg4[%c0_11, %c0_12], %21 {strides = array<i32>} : memref<8x128xf32, #tpu.memory_space<vmem>>, vector<8x128xf32>,
    } else {
    }
    %c0 = arith.constant 0 : index
    %c0_1 = arith.constant 0 : index
    %3 = vector.load %arg4[%c0, %c0_1] : memref<8x128xf32, #tpu.memory_space<vmem>>, vector<8x128xf32>
    %cst = arith.constant 0.000000e+00 : f32
    %4 = vector.broadcast %cst : f32 to vector<8x128xf32>
    %c0_i32_2 = arith.constant 0 : i32
    %c16_i32 = arith.constant 16 : i32
    %5 = arith.muli %c0_i32_2, %c16_i32 : i32
    %6 = tpu.assume_multiple %5, 16 : i32
    %7 = arith.index_cast %6 : i32 to index
    %c0_3 = arith.constant 0 : index
    %8 = vector.load %arg1[%7, %c0_3] : memref<16x128xf32, #tpu.memory_space<vmem>>, vector<16x128xf32>
    %9 = arith.index_cast %6 : i32 to index
    %c0_4 = arith.constant 0 : index
    %10 = vector.load %arg2[%9, %c0_4] : memref<16x128xf32, #tpu.memory_space<vmem>>, vector<16x128xf32>
    %11 = arith.subf %8, %10 : vector<16x128xf32>
    %12 = arith.mulf %11, %11 : vector<16x128xf32>
    %13 = vector.shape_cast %12 : vector<16x128xf32> to vector<2x8x128xf32>
    %cst_5 = arith.constant dense<0.000000e+00> : vector<8x128xf32>
    %14 = vector.multi_reduction <add>, %13, %cst_5 [0] : vector<2x8x128xf32> to vector<8x128xf32>
    %15 = arith.addf %4, %14 : vector<8x128xf32>
    %c1_i32 = arith.constant 1 : i32
    %16 = arith.addf %3, %15 : vector<8x128xf32>
    %c0_6 = arith.constant 0 : index
    %c0_7 = arith.constant 0 : index
    %17 = vector.load %arg4[%c0_6, %c0_7] : memref<8x128xf32, #tpu.memory_space<vmem>>, vector<8x128xf32>
    tpu.vector_store %arg4[%c0_6, %c0_7], %16 {strides = array<i32>} : memref<8x128xf32, #tpu.memory_space<vmem>>, vector<8x128xf32>,
    %c0_i32_8 = arith.constant 0 : i32
    %18 = arith.cmpi eq, %arg0, %c0_i32_8 : i32
    %19 = arith.extui %18 : i1 to i32
    %c0_i32_9 = arith.constant 0 : i32
    %20 = arith.cmpi ne, %19, %c0_i32_9 : i32
    scf.if %20 {
      %c0_10 = arith.constant 0 : index
      %c0_11 = arith.constant 0 : index
      %21 = vector.load %arg4[%c0_10, %c0_11] : memref<8x128xf32, #tpu.memory_space<vmem>>, vector<8x128xf32>
      %22 = vector.shape_cast %21 : vector<8x128xf32> to vector<1x8x128xf32>
      %cst_12 = arith.constant dense<0.000000e+00> : vector<1xf32>
      %23 = vector.multi_reduction <add>, %22, %cst_12 [1, 2] : vector<1x8x128xf32> to vector<1xf32>
      %24 = vector.shape_cast %23 : vector<1xf32> to vector<1x1x1xf32>
      %25 = vector.extract %24[0, 0, 0] : f32 from vector<1x1x1xf32>
      %c0_13 = arith.constant 0 : index
      %c0_14 = arith.constant 0 : index
      %26 = memref.load %arg3[%c0_13, %c0_14] : memref<1x1xf32, #tpu.memory_space<smem>>
      memref.store %25, %arg3[%c0_13, %c0_14] : memref<1x1xf32, #tpu.memory_space<smem>>
    } else {
    }
    return
  }
  func.func @transform_0(%arg0: i32) -> (i32, i32) {
    %c0_i32 = arith.constant 0 : i32
    %c0_i32_0 = arith.constant 0 : i32
    return %arg0, %c0_i32 : i32, i32
  }
  func.func @transform_1(%arg0: i32) -> (i32, i32) {
    %c0_i32 = arith.constant 0 : i32
    %c0_i32_0 = arith.constant 0 : i32
    return %arg0, %c0_i32 : i32, i32
  }
  func.func @transform_2(%arg0: i32) -> (i32, i32) {
    %c0_i32 = arith.constant 0 : i32
    %c0_i32_0 = arith.constant 0 : i32
    %c0_i32_1 = arith.constant 0 : i32
    return %c0_i32, %c0_i32_0 : i32, i32
  }
}

</mosaic_0001>

<llo_original>
// kernel: tpu_custom_call.1
$region0: #{tpu_custom_call.1}
  #allocation0 [shape = 'u32[]', space=smem, size = 0x4, offset = 0x4, fixed_abs, tag = 'smem constant byte address 0x4 - core index']
  #allocation1 [shape = 'u32[144,128]{1,0:T(1,128)}', space=vmem, size = 0x12000, scoped, tag = 'internal scratch']
  #allocation2 [shape = 'f32[8,128]{1,0:T(8,128)}', space=vmem, size = 0x1000, scoped, tag = 'scratch operand']
  %s0 = inlined_call_operand.hbm [shape: f32[16,128], index: 0, kind: input, shape index: {}]
  %s1 = inlined_call_operand.hbm [shape: f32[16,128], index: 1, kind: input, shape index: {}]
  %s2 = inlined_call_operand.hbm [shape: f32[1,1], index: 2, kind: output, shape index: {}]
  %s3 = sld [smem:[#allocation0]]
  $region34: #{tpu_custom_call.1} parent=0
    _
  %s5 = ssub.s32 1, %s3
  %s6 = scalar_select 0, %s5, %s3
  $region1: #{tpu_custom_call.1} parent=0
    #allocation3 [shape = 'u8[8192]{0}', space=vmem, size = 0x2000, scoped, tag = 'input window, operand 0, single buffered']
    #allocation4 [shape = 's32[1]{0}', space=sflag, size = 0x4, scoped, tag = 'scoped memory for tpu_custom_call.1']
    #allocation5 [shape = 's32[1]{0}', space=sflag, size = 0x4, scoped, tag = 'scoped memory for tpu_custom_call.1']
    #allocation6 [shape = 'u8[8192]{0}', space=vmem, size = 0x2000, scoped, tag = 'input window, operand 1, single buffered']
    #allocation7 [shape = 's32[1]{0}', space=sflag, size = 0x4, scoped, tag = 'scoped memory for tpu_custom_call.1']
    #allocation8 [shape = 'u8[512]{0}', space=smem, size = 0x200, scoped, tag = 'output window, operand 0, single buffered']
    %7 = vsyncpa [#allocation4], 0
    %8 = vsyncpa [#allocation7], 0
    %9 = vsyncpa [#allocation5], 0
    // Predicated region
    $region2: #{tpu_custom_call.1} parent=1 // pred_check
      _
    $region3: #{tpu_custom_call.1} parent=1 // pred_check_branch
      %11 = sbr.rel (0) target = $region5
    $region4: #{tpu_custom_call.1} parent=1 // pred_region
      %s13 = ssub.s32 256, 256
      %14 = vsyncadd [#allocation4], %s13
      %s15 = sshll.u32 [#allocation3], 4
      %s16 = int_to_ptr.vmem [resolvable:$true] %s15
      %21 = dma.hbm_to_vmem [thread:$0]  %s0, 256, %s16, [#allocation4], 128, 128, 8
    $region5: #{tpu_custom_call.1} parent=1 // pred_fallthru
      _
    // Predicated region
    $region6: #{tpu_custom_call.1} parent=1 // pred_check
      _
    $region7: #{tpu_custom_call.1} parent=1 // pred_check_branch
      %23 = sbr.rel (0) target = $region9
    $region8: #{tpu_custom_call.1} parent=1 // pred_region
      %s25 = ssub.s32 256, 256
      %26 = vsyncadd [#allocation7], %s25
      %s27 = sshll.u32 [#allocation6], 4
      %s28 = int_to_ptr.vmem [resolvable:$true] %s27
      %33 = dma.hbm_to_vmem [thread:$0]  %s1, 256, %s28, [#allocation7], 128, 128, 8
    $region9: #{tpu_custom_call.1} parent=1 // pred_fallthru
      _
    // Predicated region
    $region10: #{tpu_custom_call.1} parent=1 // pred_check
      _
    $region11: #{tpu_custom_call.1} parent=1 // pred_check_branch
      %35 = sbr.rel (0) target = $region13
    $region12: #{tpu_custom_call.1} parent=1 // pred_region
      %36 = dma.done [#allocation4], 256
    $region13: #{tpu_custom_call.1} parent=1 // pred_fallthru
      _
    // Predicated region
    $region14: #{tpu_custom_call.1} parent=1 // pred_check
      _
    $region15: #{tpu_custom_call.1} parent=1 // pred_check_branch
      %38 = sbr.rel (0) target = $region17
    $region16: #{tpu_custom_call.1} parent=1 // pred_region
      %39 = dma.done [#allocation7], 256
    $region17: #{tpu_custom_call.1} parent=1 // pred_fallthru
      _
    %p40 = scmp.eq.s32.totalorder 0, 0
    // Predicated region
    $region18: #{tpu_custom_call.1} parent=1 // pred_check
      %p41 = pneg %p40
    $region19: #{tpu_custom_call.1} parent=1 // pred_check_branch
      %43 = sbr.rel (%p41) target = $region21
    $region20: #{tpu_custom_call.1} parent=1 // pred_region
      %44 = vst [vmem:[#allocation2] sm:$0xff] 0.0
    $region21: #{tpu_custom_call.1} parent=1 // pred_fallthru
      _
    %v45 = vld [vmem:[#allocation2] sm:$0xff]
    %v46 = vld [vmem:[#allocation3] sm:$0xff]
    %v47 = vld [vmem:[#allocation3 + $0x8] sm:$0xff]
    %v48 = vld [vmem:[#allocation6] sm:$0xff]
    %v49 = vld [vmem:[#allocation6 + $0x8] sm:$0xff]
    %v50 = vsub.f32 %v46, %v48
    %v51 = vsub.f32 %v47, %v49
    %v52 = vmul.f32 %v50, %v50
    %v53 = vmul.f32 %v51, %v51
    %v54 = vadd.f32 %v52, %v53
    %v55 = vadd.f32 %v54, 0.0
    %v56 = vadd.f32 %v45, %v55
    %57 = vst [vmem:[#allocation2] sm:$0xff] %v56
    // Predicated region
    $region22: #{tpu_custom_call.1} parent=1 // pred_check
      %p58 = pneg %p40
    $region23: #{tpu_custom_call.1} parent=1 // pred_check_branch
      %60 = sbr.rel (%p58) target = $region25
    $region24: #{tpu_custom_call.1} parent=1 // pred_region
      %v61 = vld [vmem:[#allocation2] sm:$0xff]
      %62 = vadd.xlane.f32.xlu0 %v61
      %v63 = vpop.xlane.xlu0 %62
      %v64 = vrot.slane %v63, 4
      %v65 = vadd.f32 %v63, %v64
      %v66 = vrot.slane %v65, 2
      %v67 = vadd.f32 %v65, %v66
      %v68 = vrot.slane %v67, 1
      %v69 = vadd.f32 %v67, %v68
      %s70 = vtos %v69
      %s71 = scalar_lea.smem [#allocation8], 0
      %72 = sst [smem:[%s71]] %s70
    $region25: #{tpu_custom_call.1} parent=1 // pred_fallthru
      _
    // Predicated region
    $region26: #{tpu_custom_call.1} parent=1 // pred_check
      _
    $region27: #{tpu_custom_call.1} parent=1 // pred_check_branch
      %74 = sbr.rel (0) target = $region29
    $region28: #{tpu_custom_call.1} parent=1 // pred_region
      %s76 = ssub.s32 16, 16
      %77 = vsyncadd [#allocation5], %s76
      %80 = dma.smem_to_hbm [#allocation8], 16, %s2, [#allocation5]
    $region29: #{tpu_custom_call.1} parent=1 // pred_fallthru
      _
    // Predicated region
    $region30: #{tpu_custom_call.1} parent=1 // pred_check
      _
    $region31: #{tpu_custom_call.1} parent=1 // pred_check_branch
      %82 = sbr.rel (0) target = $region33
    $region32: #{tpu_custom_call.1} parent=1 // pred_region
      %83 = dma.done [#allocation5], 16
    $region33: #{tpu_custom_call.1} parent=1 // pred_fallthru
      _
    %84 = sfence
    %85 = vsyncpa [#allocation4], 1
    %86 = vsyncpa [#allocation7], 1
    %87 = vsyncpa [#allocation5], 1

</llo_original>
